<compile_context>
chip_gen: v7x
topology: tpu7x:2x2x1
jax: 0.10.0
libtpu: 0.0.40
codegen_flags: <defaults>
</compile_context>

<pallas_src>
import functools

import jax
import jax.numpy as jnp
import numpy as np
from jax.experimental import pallas as pl
from jax.experimental.pallas import tpu as pltpu


_MAX_TILE_M = 1024                 # row tile cap (<= few MiB VMEM incl. dbl-buffer)
_ROW_ALIGN = 16                    # bf16 sublane packing -> keep tiles % 16 == 0
_SPLIT_ROWS = 512                  # split big levels so v7x's 2 TCs both get work
_VMEM_LIMIT = 32 * 1024 * 1024     # explicit scoped-VMEM budget (safe v5e/v6e/v7x)


# ----------------------------------------------------------------------------
# helpers
# ----------------------------------------------------------------------------
def _round_up(n, m):
    return ((n + m - 1) // m) * m


def _row_tiling(rows, max_tile=_MAX_TILE_M):
    """(padded_rows, tile): tile % 16 == 0, padded_rows == tile * num_tiles.

    Tiles are balanced (ceil(rows/num_tiles)) so padding waste is bounded by
    ~15 rows per tile instead of up to a whole tile.
    """
    rows = max(int(rows), 1)
    nt = -(-rows // max_tile)
    if rows >= _SPLIT_ROWS:
        nt = max(nt, 2)            # v7x: let dimension_semantics=("parallel",)
    tile = _round_up(-(-rows // nt), _ROW_ALIGN)
    return tile * nt, tile


def _pad_rows_to(a, rp):
    pad = rp - a.shape[0]
    if pad:
        a = jnp.pad(a, ((0, pad),) + ((0, 0),) * (a.ndim - 1))
    return a


def _compiler_params():
    return pltpu.CompilerParams(
        dimension_semantics=("parallel",),
        vmem_limit_bytes=_VMEM_LIMIT,
    )


# ----------------------------------------------------------------------------
# Kernel 1: message step (per level)
#   lhs = [(1-el)*h_j | el*h_j | x_j]  (tile, 2h+x)   bf16
#   W   = [[U_iou|U_f],[0|W_f]]        (2h+x, 4h)     bf16
#   out = [iou_pre | f * clip(c_j)]    (tile, 4h=128) f32, ONE unmasked store
# ----------------------------------------------------------------------------
def _message_kernel(lhs_ref, cj_ref, w_ref, bf_ref, o_ref):
    hs = bf_ref.shape[-1]
    res = jnp.dot(lhs_ref[...], w_ref[...],
                  preferred_element_type=jnp.float32)          # (tile, 4h)
    # lanes 3h:4h of res == f_mid + wf_x_j (the zero-block in W handles routing)
    f = jax.nn.sigmoid(res[:, 3 * hs:] + bf_ref[...])
    c_j = jnp.clip(cj_ref[...], -1.0e14, 1.0e14)
    o_ref[...] = jnp.concatenate([res[:, :3 * hs], f * c_j], axis=-1)


def pallas_message(lhs, c_j, w_msg, b_f):
    rows, kdim = lhs.shape
    hs = b_f.shape[-1]
    rp, tile = _row_tiling(rows)
    lhs = _pad_rows_to(lhs, rp)
    c_j = _pad_rows_to(c_j, rp)
    bytes_acc = (lhs.size * lhs.dtype.itemsize + c_j.size * 4
                 + w_msg.size * w_msg.dtype.itemsize + b_f.size * 4
                 + rp * 4 * hs * 4)
    out = pl.pallas_call(
        _message_kernel,
        out_shape=jax.ShapeDtypeStruct((rp, 4 * hs), jnp.float32),
        grid=(rp // tile,),
        in_specs=[pl.BlockSpec((tile, kdim), lambda i: (i, 0)),
                  pl.BlockSpec((tile, hs), lambda i: (i, 0)),
                  pl.BlockSpec((kdim, 4 * hs), lambda i: (0, 0)),
                  pl.BlockSpec((1, hs), lambda i: (0, 0))],
        out_specs=pl.BlockSpec((tile, 4 * hs), lambda i: (i, 0)),
        compiler_params=_compiler_params(),
        cost_estimate=pl.CostEstimate(
            flops=2 * rp * kdim * 4 * hs + 6 * rp * hs,
            transcendentals=rp * hs,
            bytes_accessed=bytes_acc),
    )(lhs, c_j, w_msg, b_f)
    return out[:rows]


# ----------------------------------------------------------------------------
# Kernel 2: node update (per level)
#   x_sel (tile, x) bf16, state_sel (tile, 4h) f32 = [iou_mid | c]
#   out = [c_temp | h_new]  (tile, 2h) f32, ONE concatenated store
# ----------------------------------------------------------------------------
def _update_kernel(x_ref, st_ref, w_ref, biou_ref, o_ref):
    hs = biou_ref.shape[-1] // 3
    st = st_ref[...]
    iou = (jnp.dot(x_ref[...], w_ref[...], preferred_element_type=jnp.float32)
           + st[:, :3 * hs] + biou_ref[...])
    i = jax.nn.sigmoid(iou[:, 0:hs])
    o = jax.nn.sigmoid(iou[:, hs:2 * hs])
    u = jnp.tanh(iou[:, 2 * hs:3 * hs])
    c_temp = i * u + st[:, 3 * hs:]
    o_ref[...] = jnp.concatenate([c_temp, o * jnp.tanh(c_temp)], axis=-1)


def pallas_update(x_sel, state_sel, w_iou, b_iou):
    rows, xf = x_sel.shape
    hs = b_iou.shape[-1] // 3
    rp, tile = _row_tiling(rows)
    x_sel = _pad_rows_to(x_sel, rp)
    state_sel = _pad_rows_to(state_sel, rp)
    bytes_acc = (x_sel.size * x_sel.dtype.itemsize + state_sel.size * 4
                 + w_iou.size * w_iou.dtype.itemsize + b_iou.size * 4
                 + rp * 2 * hs * 4)
    out = pl.pallas_call(
        _update_kernel,
        out_shape=jax.ShapeDtypeStruct((rp, 2 * hs), jnp.float32),
        grid=(rp // tile,),
        in_specs=[pl.BlockSpec((tile, xf), lambda i: (i, 0)),
                  pl.BlockSpec((tile, 4 * hs), lambda i: (i, 0)),
                  pl.BlockSpec((xf, 3 * hs), lambda i: (0, 0)),
                  pl.BlockSpec((1, 3 * hs), lambda i: (0, 0))],
        out_specs=pl.BlockSpec((tile, 2 * hs), lambda i: (i, 0)),
        compiler_params=_compiler_params(),
        cost_estimate=pl.CostEstimate(
            flops=2 * rp * xf * 3 * hs + 8 * rp * hs,
            transcendentals=4 * rp * hs,
            bytes_accessed=bytes_acc),
    )(x_sel, state_sel, w_iou, b_iou)
    return out[:rows, :hs], out[:rows, hs:]          # c_temp, h_new


# ----------------------------------------------------------------------------
# parameter packing (weights stored pre-transposed as (in, out), pre-fused)
# ----------------------------------------------------------------------------
def make_params(w_iou, w_f, u_iou, u_f, b_iou, b_f, compute_dtype=jnp.bfloat16):
    x_size = w_iou.shape[0]
    h_size = w_f.shape[1]
    u_cat = jnp.concatenate([u_iou, u_f], axis=1)                         # (2h, 4h)
    x_row = jnp.concatenate(
        [jnp.zeros((x_size, 3 * h_size), jnp.float32), w_f], axis=1)      # (x, 4h)
    w_msg = jnp.concatenate([u_cat, x_row], axis=0)                       # (2h+x, 4h)
    return {
        "W_msg": w_msg.astype(compute_dtype),
        "W_iou": w_iou.astype(compute_dtype),
        "b_iou": b_iou.astype(jnp.float32),
        "b_f": b_f.astype(jnp.float32),
    }


# ----------------------------------------------------------------------------
# forward pass (Pallas kernels + jittable XLA gather/scatter glue)
# ----------------------------------------------------------------------------
@functools.partial(jax.jit, static_argnames=("len_input", "max_node_num"))
def single_round_graph_lstm_forward(params, x, edge_index, edge_attr,
                                    g_order_index, g_order, len_input,
                                    max_node_num):
    n = x.shape[0]
    hs = params["b_f"].shape[1]
    cdt = params["W_msg"].dtype
    x_c = x.astype(cdt)                          # streamed to the kernels

    h = jnp.zeros((n, hs), jnp.float32)
    state = jnp.zeros((n, 4 * hs), jnp.float32)  # [iou_mid | c] fused recurrent state

    def apply_update(state, h, order_index):
        l = order_index.shape[0]
        rp, _ = _row_tiling(l)
        oi = jnp.pad(order_index, (0, rp - l))   # pad gather index, not the floats
        c_temp, h_new = pallas_update(x_c[oi], state[oi],
                                      params["W_iou"], params["b_iou"])
        state = state.at[order_index, 3 * hs:].set(c_temp[:l])
        h = h.at[order_index].set(h_new[:l])
        return state, h

    # level 0: leaves (iou_mid = 0, c = 0)
    state, h = apply_update(state, h, g_order_index[0])

    # levels 1..L-1: message over that level's edges, then update the parents
    for lvl in range(1, len(g_order)):
        e_idx = g_order[lvl]
        e = e_idx.shape[0]
        rp, _ = _row_tiling(e)
        e_pad = jnp.pad(e_idx, (0, rp - e))
        parents = edge_index[0, e_idx]           # (E,)   scatter target
        children = edge_index[1, e_pad]          # (rp,)  padded gather index
        el = edge_attr[e_pad]                    # (rp,1) edge labels in {0,1}
        h_j = h[children]
        h_t1 = el * h_j
        # edge-type routing + x gather fused into ONE lane-dense matmul LHS
        lhs = jnp.concatenate([h_j - h_t1, h_t1, x[children]],
                              axis=1).astype(cdt)            # (rp, 2h+x)
        c_j = state[children][:, 3 * hs:]                     # (rp, h) f32
        msg = pallas_message(lhs, c_j, params["W_msg"], params["b_f"])
        # ONE fused scatter-add into [iou_mid | c]
        state = state.at[parents].add(msg[:e])
        state, h = apply_update(state, h, g_order_index[lvl])

    # pack per-graph hidden states with a single vectorized scatter
    graph_num = len(len_input)
    gids = np.repeat(np.arange(graph_num), np.asarray(len_input))
    pos = np.concatenate([np.arange(gn) for gn in len_input])
    h_out = jnp.zeros((graph_num, max_node_num, hs), jnp.float32)
    h_out = h_out.at[jnp.asarray(gids, jnp.int32),
                     jnp.asarray(pos, jnp.int32)].set(h)
    return h_out


# ----------------------------------------------------------------------------
# pure-JAX f32 reference (mirrors the PyTorch semantics), for correctness check
# ----------------------------------------------------------------------------
def reference_forward(params, x, edge_index, edge_attr, g_order_index,
                      g_order, len_input, max_node_num):
    n = x.shape[0]
    hs = params["h_size"]
    iou_x = x @ params["W_iou"]
    wf_x = x @ params["W_f"]
    h = jnp.zeros((n, hs), jnp.float32)
    c = jnp.zeros((n, hs), jnp.float32)
    iou_mid = jnp.zeros((n, 3 * hs), jnp.float32)

    def update(h, c, iou_mid, order_index):
        iou = iou_x[order_index] + iou_mid[order_index] + params["b_iou"]
        i = jax.nn.sigmoid(iou[:, :hs])
        o = jax.nn.sigmoid(iou[:, hs:2 * hs])
        u = jnp.tanh(iou[:, 2 * hs:])
        c_temp = i * u + c[order_index]
        c = c.at[order_index].set(c_temp)
        h = h.at[order_index].set(o * jnp.tanh(c_temp))
        return h, c

    h, c = update(h, c, iou_mid, g_order_index[0])
    for lvl in range(1, len(g_order)):
        e_idx = g_order[lvl]
        par = edge_index[0, e_idx]
        chl = edge_index[1, e_idx]
        el = edge_attr[e_idx]
        h_j, c_j, wfx_j = h[chl], c[chl], wf_x[chl]
        h_t1 = el * h_j
        h_t0 = (1.0 - el) * h_j
        h_two = jnp.concatenate([h_t0, h_t1], axis=1)
        iou_pre = h_two @ params["U_iou"]
        f_mid = h_two @ params["U_f"]
        f = jax.nn.sigmoid(wfx_j + f_mid + params["b_f"])
        c_j = jnp.clip(c_j, -1.0e14, 1.0e14)
        iou_mid = iou_mid.at[par].add(iou_pre)
        c = c.at[par].add(f * c_j)
        h, c = update(h, c, iou_mid, g_order_index[lvl])

    graph_num = len(len_input)
    h_out = jnp.zeros((graph_num, max_node_num, hs), jnp.float32)
    acc = 0
    for gi in range(graph_num):
        gn = int(len_input[gi])
        h_out = h_out.at[gi, :gn, :].set(h[acc:acc + gn, :])
        acc += gn
    return h_out


# ----------------------------------------------------------------------------
# main
# ----------------------------------------------------------------------------
if __name__ == "__main__":
    x_size, h_size, max_node_num = 16, 32, 6

    key = jax.random.PRNGKey(0)
    k_x, k_wiou, k_wf, k_uiou, k_uf = jax.random.split(key, 5)

    # Two small trees:
    #   graph 0: nodes 0..4  (edges parent->child: (1,2)(1,3)(0,1)(0,4))
    #   graph 1: nodes 5..8  (edges: (6,7)(5,6)(5,8))
    n = 9
    x = jax.random.normal(k_x, (n, x_size), dtype=jnp.float32)
    edge_index = jnp.array([[1, 1, 0, 0, 6, 5, 5],
                            [2, 3, 1, 4, 7, 6, 8]], dtype=jnp.int32)
    edge_attr = jnp.array([[0.], [1.], [0.], [1.], [1.], [0.], [1.]],
                          dtype=jnp.float32)          # (E, 1) edge labels in {0,1}

    # per-level node indices to update, and per-level edge indices to message
    g_order_index = [jnp.array([2, 3, 4, 7, 8], dtype=jnp.int32),   # leaves
                     jnp.array([1, 6], dtype=jnp.int32),
                     jnp.array([0, 5], dtype=jnp.int32)]
    g_order = [jnp.array([], dtype=jnp.int32),        # unused at level 0
               jnp.array([0, 1, 4], dtype=jnp.int32),
               jnp.array([2, 3, 5, 6], dtype=jnp.int32)]
    len_input = (5, 4)

    # deterministic synthetic parameters (weights stored as (in, out))
    w_iou = 0.1 * jax.random.normal(k_wiou, (x_size, 3 * h_size), jnp.float32)
    w_f = 0.1 * jax.random.normal(k_wf, (x_size, h_size), jnp.float32)
    u_iou = 0.1 * jax.random.normal(k_uiou, (2 * h_size, 3 * h_size), jnp.float32)
    u_f = 0.1 * jax.random.normal(k_uf, (2 * h_size, h_size), jnp.float32)
    b_iou = jnp.zeros((1, 3 * h_size), jnp.float32)
    b_f = jnp.zeros((1, h_size), jnp.float32)

    ref_params = {"h_size": h_size, "W_iou": w_iou, "W_f": w_f,
                  "U_iou": u_iou, "U_f": u_f, "b_iou": b_iou, "b_f": b_f}
    h_ref = jax.block_until_ready(
        reference_forward(ref_params, x, edge_index, edge_attr,
                          g_order_index, g_order, len_input, max_node_num))

    # 1) f32 compute path: exact match to the PyTorch-semantics reference.
    params_f32 = make_params(w_iou, w_f, u_iou, u_f, b_iou, b_f, jnp.float32)
    h_f32 = jax.block_until_ready(
        single_round_graph_lstm_forward(params_f32, x, edge_index, edge_attr,
                                        g_order_index, g_order,
                                        len_input=len_input,
                                        max_node_num=max_node_num))
    np.testing.assert_allclose(np.asarray(h_f32), np.asarray(h_ref),
                               rtol=1e-4, atol=1e-5)

    # 2) bf16 compute path (production: halves streamed HBM bytes; gate math,
    #    c accumulation and the clamp stay f32). Looser tolerance reflects the
    #    bf16 matmul-operand rounding only.
    params_bf16 = make_params(w_iou, w_f, u_iou, u_f, b_iou, b_f, jnp.bfloat16)
    h_bf16 = jax.block_until_ready(
        single_round_graph_lstm_forward(params_bf16, x, edge_index, edge_attr,
                                        g_order_index, g_order,
                                        len_input=len_input,
                                        max_node_num=max_node_num))
    np.testing.assert_allclose(np.asarray(h_bf16), np.asarray(h_ref),
                               rtol=5e-2, atol=5e-2)

    print("KERNEL_OK")
</pallas_src>

<mosaic_0001>
module attributes {stable_mosaic.version = 11 : i64} {
  func.func @_update_kernel(%arg0: i32, %arg1: memref<16x16xf32, #tpu.memory_space<vmem>>, %arg2: memref<16x128xf32, #tpu.memory_space<vmem>>, %arg3: memref<16x96xf32, #tpu.memory_space<vmem>>, %arg4: memref<1x96xf32, #tpu.memory_space<vmem>>, %arg5: memref<16x64xf32, #tpu.memory_space<vmem>>) attributes {dimension_semantics = [#tpu.dimension_semantics<parallel>], iteration_bounds = array<i64: 1>, scalar_prefetch = 0 : i64, scratch_operands = 0 : i64, tpu.core_type = #tpu.core_type<tc>, window_params = [{transform_indices = @transform_0, window_bounds = array<i64: 16, 16>}, {transform_indices = @transform_1, window_bounds = array<i64: 16, 128>}, {pipeline_mode = #tpu.pipeline_mode<synchronous>, transform_indices = @transform_2, window_bounds = array<i64: 16, 96>}, {pipeline_mode = #tpu.pipeline_mode<synchronous>, transform_indices = @transform_3, window_bounds = array<i64: 1, 96>}, {transform_indices = @transform_4, window_bounds = array<i64: 16, 64>}]} {
    %c0 = arith.constant 0 : index
    %c0_0 = arith.constant 0 : index
    %0 = vector.load %arg2[%c0, %c0_0] : memref<16x128xf32, #tpu.memory_space<vmem>>, vector<16x128xf32>
    %c0_1 = arith.constant 0 : index
    %c0_2 = arith.constant 0 : index
    %1 = vector.load %arg1[%c0_1, %c0_2] : memref<16x16xf32, #tpu.memory_space<vmem>>, vector<16x16xf32>
    %c0_3 = arith.constant 0 : index
    %c0_4 = arith.constant 0 : index
    %2 = vector.load %arg3[%c0_3, %c0_4] : memref<16x96xf32, #tpu.memory_space<vmem>>, vector<16x96xf32>
    %cst = arith.constant dense<0.000000e+00> : vector<16x96xf32>
    %3 = tpu.matmul %1, %2, %cst {dimension_numbers = #tpu.dot_dimension_numbers<[1], [0], [0], [1], [0, 0, 1, 1], [], []>} : vector<16x16xf32>, vector<16x96xf32>, vector<16x96xf32> -> vector<16x96xf32>
    %4 = vector.extract_strided_slice %0 {offsets = [0, 0], sizes = [16, 96], strides = [1, 1]} : vector<16x128xf32> to vector<16x96xf32>
    %5 = arith.addf %3, %4 : vector<16x96xf32>
    %c0_5 = arith.constant 0 : index
    %c0_6 = arith.constant 0 : index
    %6 = vector.load %arg4[%c0_5, %c0_6] : memref<1x96xf32, #tpu.memory_space<vmem>>, vector<1x96xf32>
    %7 = vector.broadcast %6 : vector<1x96xf32> to vector<16x96xf32>
    %8 = arith.addf %5, %7 : vector<16x96xf32>
    %9 = vector.extract_strided_slice %8 {offsets = [0, 0], sizes = [16, 32], strides = [1, 1]} : vector<16x96xf32> to vector<16x32xf32>
    %10 = arith.negf %9 : vector<16x32xf32>
    %11 = math.exp %10 : vector<16x32xf32>
    %cst_7 = arith.constant 1.000000e+00 : f32
    %12 = vector.broadcast %cst_7 : f32 to vector<16x32xf32>
    %13 = arith.addf %12, %11 : vector<16x32xf32>
    %14 = arith.divf %12, %13 : vector<16x32xf32>
    %15 = vector.extract_strided_slice %8 {offsets = [0, 32], sizes = [16, 32], strides = [1, 1]} : vector<16x96xf32> to vector<16x32xf32>
    %16 = arith.negf %15 : vector<16x32xf32>
    %17 = math.exp %16 : vector<16x32xf32>
    %cst_8 = arith.constant 1.000000e+00 : f32
    %18 = vector.broadcast %cst_8 : f32 to vector<16x32xf32>
    %19 = arith.addf %18, %17 : vector<16x32xf32>
    %20 = arith.divf %18, %19 : vector<16x32xf32>
    %21 = vector.extract_strided_slice %8 {offsets = [0, 64], sizes = [16, 32], strides = [1, 1]} : vector<16x96xf32> to vector<16x32xf32>
    %22 = math.tanh %21 : vector<16x32xf32>
    %23 = arith.mulf %14, %22 : vector<16x32xf32>
    %24 = vector.extract_strided_slice %0 {offsets = [0, 96], sizes = [16, 32], strides = [1, 1]} : vector<16x128xf32> to vector<16x32xf32>
    %25 = arith.addf %23, %24 : vector<16x32xf32>
    %26 = math.tanh %25 : vector<16x32xf32>
    %27 = arith.mulf %20, %26 : vector<16x32xf32>
    %28 = tpu.concatenate %25, %27 in 1 : vector<16x32xf32>, vector<16x32xf32> -> vector<16x64xf32>
    %c0_9 = arith.constant 0 : index
    %c0_10 = arith.constant 0 : index
    %29 = vector.load %arg5[%c0_9, %c0_10] : memref<16x64xf32, #tpu.memory_space<vmem>>, vector<16x64xf32>
    tpu.vector_store %arg5[%c0_9, %c0_10], %28 {strides = array<i32>} : memref<16x64xf32, #tpu.memory_space<vmem>>, vector<16x64xf32>,
    return
  }
  func.func @transform_0(%arg0: i32) -> (i32, i32) {
    %c0_i32 = arith.constant 0 : i32
    %c0_i32_0 = arith.constant 0 : i32
    return %arg0, %c0_i32 : i32, i32
  }
  func.func @transform_1(%arg0: i32) -> (i32, i32) {
    %c0_i32 = arith.constant 0 : i32
    %c0_i32_0 = arith.constant 0 : i32
    return %arg0, %c0_i32 : i32, i32
  }
  func.func @transform_2(%arg0: i32) -> (i32, i32) {
    %c0_i32 = arith.constant 0 : i32
    %c0_i32_0 = arith.constant 0 : i32
    %c0_i32_1 = arith.constant 0 : i32
    return %c0_i32, %c0_i32_0 : i32, i32
  }
  func.func @transform_3(%arg0: i32) -> (i32, i32) {
    %c0_i32 = arith.constant 0 : i32
    %c0_i32_0 = arith.constant 0 : i32
    %c0_i32_1 = arith.constant 0 : i32
    return %c0_i32, %c0_i32_0 : i32, i32
  }
  func.func @transform_4(%arg0: i32) -> (i32, i32) {
    %c0_i32 = arith.constant 0 : i32
    %c0_i32_0 = arith.constant 0 : i32
    return %arg0, %c0_i32 : i32, i32
  }
}

module attributes {stable_mosaic.version = 11 : i64} {
  func.func @_message_kernel(%arg0: i32, %arg1: memref<16x80xf32, #tpu.memory_space<vmem>>, %arg2: memref<16x32xf32, #tpu.memory_space<vmem>>, %arg3: memref<80x128xf32, #tpu.memory_space<vmem>>, %arg4: memref<1x32xf32, #tpu.memory_space<vmem>>, %arg5: memref<16x128xf32, #tpu.memory_space<vmem>>) attributes {dimension_semantics = [#tpu.dimension_semantics<parallel>], iteration_bounds = array<i64: 1>, scalar_prefetch = 0 : i64, scratch_operands = 0 : i64, tpu.core_type = #tpu.core_type<tc>, window_params = [{transform_indices = @transform_0, window_bounds = array<i64: 16, 80>}, {transform_indices = @transform_1, window_bounds = array<i64: 16, 32>}, {pipeline_mode = #tpu.pipeline_mode<synchronous>, transform_indices = @transform_2, window_bounds = array<i64: 80, 128>}, {pipeline_mode = #tpu.pipeline_mode<synchronous>, transform_indices = @transform_3, window_bounds = array<i64: 1, 32>}, {transform_indices = @transform_4, window_bounds = array<i64: 16, 128>}]} {
    %c0 = arith.constant 0 : index
    %c0_0 = arith.constant 0 : index
    %0 = vector.load %arg1[%c0, %c0_0] : memref<16x80xf32, #tpu.memory_space<vmem>>, vector<16x80xf32>
    %c0_1 = arith.constant 0 : index
    %c0_2 = arith.constant 0 : index
    %1 = vector.load %arg3[%c0_1, %c0_2] : memref<80x128xf32, #tpu.memory_space<vmem>>, vector<80x128xf32>
    %cst = arith.constant dense<0.000000e+00> : vector<16x128xf32>
    %2 = tpu.matmul %0, %1, %cst {dimension_numbers = #tpu.dot_dimension_numbers<[1], [0], [0], [1], [0, 0, 1, 1], [], []>} : vector<16x80xf32>, vector<80x128xf32>, vector<16x128xf32> -> vector<16x128xf32>
    %3 = vector.extract_strided_slice %2 {offsets = [0, 96], sizes = [16, 32], strides = [1, 1]} : vector<16x128xf32> to vector<16x32xf32>
    %c0_3 = arith.constant 0 : index
    %c0_4 = arith.constant 0 : index
    %4 = vector.load %arg4[%c0_3, %c0_4] : memref<1x32xf32, #tpu.memory_space<vmem>>, vector<1x32xf32>
    %5 = vector.broadcast %4 : vector<1x32xf32> to vector<16x32xf32>
    %6 = arith.addf %3, %5 : vector<16x32xf32>
    %7 = arith.negf %6 : vector<16x32xf32>
    %8 = math.exp %7 : vector<16x32xf32>
    %cst_5 = arith.constant 1.000000e+00 : f32
    %9 = vector.broadcast %cst_5 : f32 to vector<16x32xf32>
    %10 = arith.addf %9, %8 : vector<16x32xf32>
    %11 = arith.divf %9, %10 : vector<16x32xf32>
    %c0_6 = arith.constant 0 : index
    %c0_7 = arith.constant 0 : index
    %12 = vector.load %arg2[%c0_6, %c0_7] : memref<16x32xf32, #tpu.memory_space<vmem>>, vector<16x32xf32>
    %cst_8 = arith.constant -1.000000e+14 : f32
    %cst_9 = arith.constant 1.000000e+14 : f32
    %13 = vector.broadcast %cst_8 : f32 to vector<16x32xf32>
    %14 = arith.maximumf %13, %12 : vector<16x32xf32>
    %15 = vector.broadcast %cst_9 : f32 to vector<16x32xf32>
    %16 = arith.minimumf %15, %14 : vector<16x32xf32>
    %17 = vector.extract_strided_slice %2 {offsets = [0, 0], sizes = [16, 96], strides = [1, 1]} : vector<16x128xf32> to vector<16x96xf32>
    %18 = arith.mulf %11, %16 : vector<16x32xf32>
    %19 = tpu.concatenate %17, %18 in 1 : vector<16x96xf32>, vector<16x32xf32> -> vector<16x128xf32>
    %c0_10 = arith.constant 0 : index
    %c0_11 = arith.constant 0 : index
    %20 = vector.load %arg5[%c0_10, %c0_11] : memref<16x128xf32, #tpu.memory_space<vmem>>, vector<16x128xf32>
    tpu.vector_store %arg5[%c0_10, %c0_11], %19 {strides = array<i32>} : memref<16x128xf32, #tpu.memory_space<vmem>>, vector<16x128xf32>,
    return
  }
  func.func @transform_0(%arg0: i32) -> (i32, i32) {
    %c0_i32 = arith.constant 0 : i32
    %c0_i32_0 = arith.constant 0 : i32
    return %arg0, %c0_i32 : i32, i32
  }
  func.func @transform_1(%arg0: i32) -> (i32, i32) {
    %c0_i32 = arith.constant 0 : i32
    %c0_i32_0 = arith.constant 0 : i32
    return %arg0, %c0_i32 : i32, i32
  }
  func.func @transform_2(%arg0: i32) -> (i32, i32) {
    %c0_i32 = arith.constant 0 : i32
    %c0_i32_0 = arith.constant 0 : i32
    %c0_i32_1 = arith.constant 0 : i32
    return %c0_i32, %c0_i32_0 : i32, i32
  }
  func.func @transform_3(%arg0: i32) -> (i32, i32) {
    %c0_i32 = arith.constant 0 : i32
    %c0_i32_0 = arith.constant 0 : i32
    %c0_i32_1 = arith.constant 0 : i32
    return %c0_i32, %c0_i32_0 : i32, i32
  }
  func.func @transform_4(%arg0: i32) -> (i32, i32) {
    %c0_i32 = arith.constant 0 : i32
    %c0_i32_0 = arith.constant 0 : i32
    return %arg0, %c0_i32 : i32, i32
  }
}

</mosaic_0001>

<llo_original>
// kernel: single_round_graph_lstm_forward.5
$region0: #{single_round_graph_lstm_forward.5}
  #allocation0 [shape = 'u32[]', space=smem, size = 0x4, offset = 0x4, fixed_abs, tag = 'smem constant byte address 0x4 - core index']
  #allocation1 [shape = 'u32[144,128]{1,0:T(1,128)}', space=vmem, size = 0x12000, scoped, tag = 'internal scratch']
  %s0 = inlined_call_operand.vmem [shape: f32[16,16], index: 0, kind: input, shape index: {}]
  %s1 = inlined_call_operand.vmem [shape: f32[16,128], index: 1, kind: input, shape index: {}]
  %s2 = inlined_call_operand.vmem [shape: f32[16,96], index: 2, kind: input, shape index: {}]
  %s3 = inlined_call_operand.vmem [shape: f32[1,96], index: 3, kind: input, shape index: {}]
  %s4 = inlined_call_operand.vmem [shape: f32[16,64], index: 4, kind: output, shape index: {}]
  %s5 = sld [smem:[#allocation0]]
  $region26: #{single_round_graph_lstm_forward.5} parent=0
    _
  %s7 = ssub.s32 1, %s5
  %s8 = scalar_select 0, %s7, %s5
  // Predicated region
  $region2: #{single_round_graph_lstm_forward.5} parent=0 // pred_check
    _
  $region3: #{single_round_graph_lstm_forward.5} parent=0 // pred_check_branch
    %10 = sbr.rel (0) target = $region5
  $region4: #{single_round_graph_lstm_forward.5} parent=0 // pred_region
    _
  $region5: #{single_round_graph_lstm_forward.5} parent=0 // pred_fallthru
    _
  // Predicated region
  $region6: #{single_round_graph_lstm_forward.5} parent=0 // pred_check
    _
  $region7: #{single_round_graph_lstm_forward.5} parent=0 // pred_check_branch
    %12 = sbr.rel (0) target = $region9
  $region8: #{single_round_graph_lstm_forward.5} parent=0 // pred_region
    _
  $region9: #{single_round_graph_lstm_forward.5} parent=0 // pred_fallthru
    _
  // Predicated region
  $region10: #{single_round_graph_lstm_forward.5} parent=0 // pred_check
    _
  $region11: #{single_round_graph_lstm_forward.5} parent=0 // pred_check_branch
    %14 = sbr.rel (0) target = $region13
  $region12: #{single_round_graph_lstm_forward.5} parent=0 // pred_region
    _
  $region13: #{single_round_graph_lstm_forward.5} parent=0 // pred_fallthru
    _
  // Predicated region
  $region14: #{single_round_graph_lstm_forward.5} parent=0 // pred_check
    _
  $region15: #{single_round_graph_lstm_forward.5} parent=0 // pred_check_branch
    %16 = sbr.rel (0) target = $region17
  $region16: #{single_round_graph_lstm_forward.5} parent=0 // pred_region
    _
  $region17: #{single_round_graph_lstm_forward.5} parent=0 // pred_fallthru
    _
  %v17 = vld [vmem:[%s1] sm:$0xff]
  %v18 = vld [vmem:[%s1 + $0x8] sm:$0xff]
  %v19 = vld [vmem:[%s0] sm:$0xff]
  %v20 = vld [vmem:[%s0 + $0x8] sm:$0xff]
  %v21 = vld [vmem:[%s2] sm:$0xff]
  %v22 = vld [vmem:[%s2 + $0x8] sm:$0xff]
  %vm23 = vcmask 130048
  %v25 = vsel %vm23, %v19, 0
  %v28 = vsel %vm23, %v20, 0
  %30 = vmatprep.subr.mxu0 0.0
  %31 = vmatpush1.msra.mxu0 %v21
  %32 = vmatprep.subr.mxu0 0.0
  %33 = vmatpush1.msra.mxu0 %v22
  %34 = vmatprep.subr.mxu0 0.0
  %35 = vmatpush1.msra.mxu0 0.0
  %36 = vmatprep.subr.mxu0 0.0
  %37 = vmatpush1.msra.mxu0 0.0
  %38 = vmatprep.subr.mxu0 0.0
  %39 = vmatpush1.msra.mxu0 0.0
  %40 = vmatprep.subr.mxu0 0.0
  %41 = vmatpush1.msra.mxu0 0.0
  %42 = vmatprep.subr.mxu0 0.0
  %43 = vmatpush1.msra.mxu0 0.0
  %44 = vmatprep.subr.mxu0 0.0
  %45 = vmatpush1.msra.mxu0 0.0
  %46 = vmatprep.subr.mxu0 0.0
  %47 = vmatpush1.msra.mxu0 0.0
  %48 = vmatprep.subr.mxu0 0.0
  %49 = vmatpush1.msra.mxu0 0.0
  %50 = vmatprep.subr.mxu0 0.0
  %51 = vmatpush1.msra.mxu0 0.0
  %52 = vmatprep.subr.mxu0 0.0
  %53 = vmatpush1.msra.mxu0 0.0
  %54 = vmatprep.subr.mxu0 0.0
  %55 = vmatpush1.msra.mxu0 0.0
  %56 = vmatprep.subr.mxu0 0.0
  %57 = vmatpush1.msra.mxu0 0.0
  %58 = vmatprep.subr.mxu0 0.0
  %59 = vmatpush1.msra.mxu0 0.0
  %60 = vmatprep.subr.mxu0 0.0
  %61 = vmatpush1.msra.mxu0 0.0
  %62 = vmatprep.subr.mxu0 0.0
  %63 = vmatpush1.msra.mxu0 0.0
  %64 = vmatprep.subr.mxu0 0.0
  %65 = vmatpush1.msra.mxu0 0.0
  %66 = vmatprep.subr.mxu0 0.0
  %67 = vmatpush1.msra.mxu0 0.0
  %68 = vmatprep.subr.mxu0 0.0
  %69 = vmatpush1.msra.mxu0 0.0
  %70 = vmatprep.subr.mxu0 0.0
  %71 = vmatpush1.msra.mxu0 0.0
  %72 = vmatprep.subr.mxu0 0.0
  %73 = vmatpush1.msra.mxu0 0.0
  %74 = vmatprep.subr.mxu0 0.0
  %75 = vmatpush1.msra.mxu0 0.0
  %76 = vmatprep.subr.mxu0 0.0
  %77 = vmatpush1.msra.mxu0 0.0
  %78 = vmatprep.subr.mxu0 0.0
  %79 = vmatpush1.msra.mxu0 0.0
  %80 = vmatprep.subr.mxu0 0.0
  %81 = vmatpush1.msra.mxu0 0.0
  %82 = vmatprep.subr.mxu0 0.0
  %83 = vmatpush1.msra.mxu0 0.0
  %84 = vmatprep.subr.mxu0 0.0
  %85 = vmatpush1.msra.mxu0 0.0
  %86 = vmatprep.subr.mxu0 0.0
  %87 = vmatpush1.msra.mxu0 0.0
  %88 = vmatprep.subr.mxu0 0.0
  %89 = vmatpush1.msra.mxu0 0.0
  %90 = vmatprep.subr.mxu0 0.0
  %91 = vmatpush1.msra.mxu0 0.0
  %92 = vmatprep.subr.mxu0 0.0
  %93 = vmatpush1.msra.mxu0 0.0
  %94 = vmatprep.mubr.f32.mxu0 0.0
  %95 = vmatmul.mubr.f32.gmra.mrb[0].mxu0 %v25
  %v96 = vpop.f32.mrb[0].mxu0
  %v97 = vadd.f32 %v17, %v96
  %v98 = vpop.f32.mrb[0].mxu0
  %99 = vmatprep.mubr.f32.mxu0 0.0
  %100 = vmatmul.mubr.f32.gmra.mrb[0].mxu0 %v28
  %v101 = vpop.f32.mrb[0].mxu0
  %v102 = vadd.f32 %v18, %v101
  %v103 = vpop.f32.mrb[0].mxu0
  %104 = vdwg.mxu0
  %v105 = vld [vmem:[%s3] sm:$0x1]
  %v107 = vlaneseq
  %v108 = vshrl.u32 %v107, 7
  %v109 = vsub.s32 0, %v108
  %v110 = vrot.slane %v105, %v109
  %v112 = vadd.f32 %v97, %v110
  %v113 = vadd.f32 %v102, %v110
  %v114 = vxor.u32 %v112, 2147483648
  %v115 = vxor.u32 %v113, 2147483648
  %v116 = vmul.f32 %v114, 1.442695
  %v117 = vpow.pop %v116
  %v118 = vmul.f32 %v115, 1.442695
  %v119 = vpow.pop %v118
  %v120 = vadd.f32 %v117, 1.0
  %v121 = vadd.f32 %v119, 1.0
  %v122 = vrcp.pop %v120
  %v123 = vmul.f32 1.0, %v122
  %v124 = vrcp.pop %v121
  %v125 = vmul.f32 1.0, %v124
  %v126 = vtanh.pop %v112
  %v127 = vtanh.pop %v113
  %130 = vrot.lane.b32.xlu0 %v126, 64
  %v131 = vpop.permute.xlu0 %130
  %132 = vrot.lane.b32.xlu0 %v127, 64
  %v133 = vpop.permute.xlu0 %132
  %v136 = vmul.f32 %v123, %v131
  %v137 = vmul.f32 %v125, %v133
  %140 = vrot.lane.b32.xlu0 %v17, 32
  %v141 = vpop.permute.xlu0 %140
  %142 = vrot.lane.b32.xlu0 %v18, 32
  %v143 = vpop.permute.xlu0 %142
  %v146 = vadd.f32 %v136, %v141
  %v147 = vadd.f32 %v137, %v143
  %v148 = vtanh.pop %v146
  %v149 = vtanh.pop %v147
  %152 = vrot.lane.b32.xlu0 %v148, 32
  %v153 = vpop.permute.xlu0 %152
  %154 = vrot.lane.b32.xlu0 %v149, 32
  %v155 = vpop.permute.xlu0 %154
  %v158 = vmul.f32 %v123, %v153
  %v159 = vmul.f32 %v125, %v155
  %vm160 = vcmask 261120
  %v161 = vsel %vm160, %v146, %v158
  %v162 = vsel %vm160, %v147, %v159
  %vm163 = vcmask 523264
  %164 = vst.msk [vmem:[%s4] sm:$0xff] %vm163, %v161
  %165 = vst.msk [vmem:[%s4 + $0x8] sm:$0xff] %vm163, %v162
  // Predicated region
  $region18: #{single_round_graph_lstm_forward.5} parent=0 // pred_check
    _
  $region19: #{single_round_graph_lstm_forward.5} parent=0 // pred_check_branch
    %167 = sbr.rel (0) target = $region21
  $region20: #{single_round_graph_lstm_forward.5} parent=0 // pred_region
    _
  $region21: #{single_round_graph_lstm_forward.5} parent=0 // pred_fallthru
    _
  // Predicated region
  $region22: #{single_round_graph_lstm_forward.5} parent=0 // pred_check
    _
  $region23: #{single_round_graph_lstm_forward.5} parent=0 // pred_check_branch
    %169 = sbr.rel (0) target = $region25
  $region24: #{single_round_graph_lstm_forward.5} parent=0 // pred_region
    _
  $region25: #{single_round_graph_lstm_forward.5} parent=0 // pred_fallthru
    _

// kernel: single_round_graph_lstm_forward.6
$region0: #{single_round_graph_lstm_forward.6}
  #allocation0 [shape = 'u32[]', space=smem, size = 0x4, offset = 0x4, fixed_abs, tag = 'smem constant byte address 0x4 - core index']
  #allocation1 [shape = 'u32[144,128]{1,0:T(1,128)}', space=vmem, size = 0x12000, scoped, tag = 'internal scratch']
  %s0 = inlined_call_operand.vmem [shape: f32[16,80], index: 0, kind: input, shape index: {}]
  %s1 = inlined_call_operand.vmem [shape: f32[16,32], index: 1, kind: input, shape index: {}]
  %s2 = inlined_call_operand.vmem [shape: f32[80,128], index: 2, kind: input, shape index: {}]
  %s3 = inlined_call_operand.vmem [shape: f32[1,32], index: 3, kind: input, shape index: {}]
  %s4 = inlined_call_operand.vmem [shape: f32[16,128], index: 4, kind: output, shape index: {}]
  %s5 = sld [smem:[#allocation0]]
  $region26: #{single_round_graph_lstm_forward.6} parent=0
    _
  %s7 = ssub.s32 1, %s5
  %s8 = scalar_select 0, %s7, %s5
  // Predicated region
  $region2: #{single_round_graph_lstm_forward.6} parent=0 // pred_check
    _
  $region3: #{single_round_graph_lstm_forward.6} parent=0 // pred_check_branch
    %10 = sbr.rel (0) target = $region5
  $region4: #{single_round_graph_lstm_forward.6} parent=0 // pred_region
    _
  $region5: #{single_round_graph_lstm_forward.6} parent=0 // pred_fallthru
    _
  // Predicated region
  $region6: #{single_round_graph_lstm_forward.6} parent=0 // pred_check
    _
  $region7: #{single_round_graph_lstm_forward.6} parent=0 // pred_check_branch
    %12 = sbr.rel (0) target = $region9
  $region8: #{single_round_graph_lstm_forward.6} parent=0 // pred_region
    _
  $region9: #{single_round_graph_lstm_forward.6} parent=0 // pred_fallthru
    _
  // Predicated region
  $region10: #{single_round_graph_lstm_forward.6} parent=0 // pred_check
    _
  $region11: #{single_round_graph_lstm_forward.6} parent=0 // pred_check_branch
    %14 = sbr.rel (0) target = $region13
  $region12: #{single_round_graph_lstm_forward.6} parent=0 // pred_region
    _
  $region13: #{single_round_graph_lstm_forward.6} parent=0 // pred_fallthru
    _
  // Predicated region
  $region14: #{single_round_graph_lstm_forward.6} parent=0 // pred_check
    _
  $region15: #{single_round_graph_lstm_forward.6} parent=0 // pred_check_branch
    %16 = sbr.rel (0) target = $region17
  $region16: #{single_round_graph_lstm_forward.6} parent=0 // pred_region
    _
  $region17: #{single_round_graph_lstm_forward.6} parent=0 // pred_fallthru
    _
  %v17 = vld [vmem:[%s0] sm:$0xff]
  %v18 = vld [vmem:[%s0 + $0x8] sm:$0xff]
  %v19 = vld [vmem:[%s2] sm:$0xff]
  %v20 = vld [vmem:[%s2 + $0x8] sm:$0xff]
  %v21 = vld [vmem:[%s2 + $0x10] sm:$0xff]
  %v22 = vld [vmem:[%s2 + $0x18] sm:$0xff]
  %v23 = vld [vmem:[%s2 + $0x20] sm:$0xff]
  %v24 = vld [vmem:[%s2 + $0x28] sm:$0xff]
  %v25 = vld [vmem:[%s2 + $0x30] sm:$0xff]
  %v26 = vld [vmem:[%s2 + $0x38] sm:$0xff]
  %v27 = vld [vmem:[%s2 + $0x40] sm:$0xff]
  %v28 = vld [vmem:[%s2 + $0x48] sm:$0xff]
  %vm29 = vcmask 654336
  %v31 = vsel %vm29, %v17, 0
  %v34 = vsel %vm29, %v18, 0
  %36 = vmatprep.subr.mxu0 0.0
  %37 = vmatpush1.msra.mxu0 %v19
  %38 = vmatprep.subr.mxu0 0.0
  %39 = vmatpush1.msra.mxu0 %v20
  %40 = vmatprep.subr.mxu0 0.0
  %41 = vmatpush1.msra.mxu0 %v21
  %42 = vmatprep.subr.mxu0 0.0
  %43 = vmatpush1.msra.mxu0 %v22
  %44 = vmatprep.subr.mxu0 0.0
  %45 = vmatpush1.msra.mxu0 %v23
  %46 = vmatprep.subr.mxu0 0.0
  %47 = vmatpush1.msra.mxu0 %v24
  %48 = vmatprep.subr.mxu0 0.0
  %49 = vmatpush1.msra.mxu0 %v25
  %50 = vmatprep.subr.mxu0 0.0
  %51 = vmatpush1.msra.mxu0 %v26
  %52 = vmatprep.subr.mxu0 0.0
  %53 = vmatpush1.msra.mxu0 %v27
  %54 = vmatprep.subr.mxu0 0.0
  %55 = vmatpush1.msra.mxu0 %v28
  %56 = vmatprep.subr.mxu0 0.0
  %57 = vmatpush1.msra.mxu0 0.0
  %58 = vmatprep.subr.mxu0 0.0
  %59 = vmatpush1.msra.mxu0 0.0
  %60 = vmatprep.subr.mxu0 0.0
  %61 = vmatpush1.msra.mxu0 0.0
  %62 = vmatprep.subr.mxu0 0.0
  %63 = vmatpush1.msra.mxu0 0.0
  %64 = vmatprep.subr.mxu0 0.0
  %65 = vmatpush1.msra.mxu0 0.0
  %66 = vmatprep.subr.mxu0 0.0
  %67 = vmatpush1.msra.mxu0 0.0
  %68 = vmatprep.subr.mxu0 0.0
  %69 = vmatpush1.msra.mxu0 0.0
  %70 = vmatprep.subr.mxu0 0.0
  %71 = vmatpush1.msra.mxu0 0.0
  %72 = vmatprep.subr.mxu0 0.0
  %73 = vmatpush1.msra.mxu0 0.0
  %74 = vmatprep.subr.mxu0 0.0
  %75 = vmatpush1.msra.mxu0 0.0
  %76 = vmatprep.subr.mxu0 0.0
  %77 = vmatpush1.msra.mxu0 0.0
  %78 = vmatprep.subr.mxu0 0.0
  %79 = vmatpush1.msra.mxu0 0.0
  %80 = vmatprep.subr.mxu0 0.0
  %81 = vmatpush1.msra.mxu0 0.0
  %82 = vmatprep.subr.mxu0 0.0
  %83 = vmatpush1.msra.mxu0 0.0
  %84 = vmatprep.subr.mxu0 0.0
  %85 = vmatpush1.msra.mxu0 0.0
  %86 = vmatprep.subr.mxu0 0.0
  %87 = vmatpush1.msra.mxu0 0.0
  %88 = vmatprep.subr.mxu0 0.0
  %89 = vmatpush1.msra.mxu0 0.0
  %90 = vmatprep.subr.mxu0 0.0
  %91 = vmatpush1.msra.mxu0 0.0
  %92 = vmatprep.subr.mxu0 0.0
  %93 = vmatpush1.msra.mxu0 0.0
  %94 = vmatprep.subr.mxu0 0.0
  %95 = vmatpush1.msra.mxu0 0.0
  %96 = vmatprep.subr.mxu0 0.0
  %97 = vmatpush1.msra.mxu0 0.0
  %98 = vmatprep.subr.mxu0 0.0
  %99 = vmatpush1.msra.mxu0 0.0
  %100 = vmatprep.mubr.f32.mxu0 0.0
  %101 = vmatmul.mubr.f32.gmra.mrb[0].mxu0 %v31
  %v102 = vpop.f32.mrb[0].mxu0
  %v103 = vadd.f32 0.0, %v102
  %v104 = vpop.f32.mrb[0].mxu0
  %105 = vmatprep.mubr.f32.mxu0 0.0
  %106 = vmatmul.mubr.f32.gmra.mrb[0].mxu0 %v34
  %v107 = vpop.f32.mrb[0].mxu0
  %v108 = vadd.f32 0.0, %v107
  %v109 = vpop.f32.mrb[0].mxu0
  %110 = vdwg.mxu0
  %v111 = vld [vmem:[%s3] sm:$0x1]
  %v113 = vlaneseq
  %v114 = vshrl.u32 %v113, 7
  %v115 = vsub.s32 0, %v114
  %v116 = vrot.slane %v111, %v115
  %117 = vrot.lane.b32.xlu0 %v116, 96
  %v118 = vpop.permute.xlu0 %117
  %v120 = vadd.f32 %v103, %v118
  %v121 = vadd.f32 %v108, %v118
  %v122 = vxor.u32 %v120, 2147483648
  %v123 = vxor.u32 %v121, 2147483648
  %v124 = vmul.f32 %v122, 1.442695
  %v125 = vpow.pop %v124
  %v126 = vmul.f32 %v123, 1.442695
  %v127 = vpow.pop %v126
  %v128 = vadd.f32 %v125, 1.0
  %v129 = vadd.f32 %v127, 1.0
  %v130 = vrcp.pop %v128
  %v131 = vmul.f32 1.0, %v130
  %v132 = vrcp.pop %v129
  %v133 = vmul.f32 1.0, %v132
  %v134 = vld [vmem:[%s1] sm:$0xff]
  %v135 = vld [vmem:[%s1 + $0x8] sm:$0xff]
  %v136 = vmax.f32 %v134, -1e+14
  %v137 = vmax.f32 %v135, -1e+14
  %v138 = vmin.f32 %v136, 1e+14
  %v139 = vmin.f32 %v137, 1e+14
  %142 = vrot.lane.b32.xlu0 %v138, 96
  %v143 = vpop.permute.xlu0 %142
  %144 = vrot.lane.b32.xlu0 %v139, 96
  %v145 = vpop.permute.xlu0 %144
  %v148 = vmul.f32 %v131, %v143
  %v149 = vmul.f32 %v133, %v145
  %vm150 = vcmask 785408
  %v151 = vsel %vm150, %v103, %v148
  %v152 = vsel %vm150, %v108, %v149
  %153 = vst [vmem:[%s4] sm:$0xff] %v151
  %154 = vst [vmem:[%s4 + $0x8] sm:$0xff] %v152
  // Predicated region
  $region18: #{single_round_graph_lstm_forward.6} parent=0 // pred_check
    _
  $region19: #{single_round_graph_lstm_forward.6} parent=0 // pred_check_branch
    %156 = sbr.rel (0) target = $region21
  $region20: #{single_round_graph_lstm_forward.6} parent=0 // pred_region
    _
  $region21: #{single_round_graph_lstm_forward.6} parent=0 // pred_fallthru
    _
  // Predicated region
  $region22: #{single_round_graph_lstm_forward.6} parent=0 // pred_check
    _
  $region23: #{single_round_graph_lstm_forward.6} parent=0 // pred_check_branch
    %158 = sbr.rel (0) target = $region25
  $region24: #{single_round_graph_lstm_forward.6} parent=0 // pred_region
    _
  $region25: #{single_round_graph_lstm_forward.6} parent=0 // pred_fallthru
    _

</llo_original>
